<compile_context>
chip_gen: v7x
topology: tpu7x:2x2x1
jax: 0.10.0
libtpu: 0.0.40
codegen_flags: <defaults>
</compile_context>

<pallas_src>
import functools

import jax
import jax.numpy as jnp
from jax import lax
from jax.experimental import pallas as pl
from jax.experimental.pallas import tpu as pltpu


def _elementwise_loss(diff, loss_type):
    """Per-element loss. Matches torch L1Loss / MSELoss / SmoothL1Loss(beta=1)."""
    if loss_type == "l1":
        return jnp.abs(diff)
    if loss_type == "l2":
        return diff * diff
    if loss_type == "l1_smooth":
        a = jnp.abs(diff)
        return jnp.where(a < 1.0, 0.5 * diff * diff, a - 0.5)
    raise ValueError(f"unknown loss_type {loss_type!r}")


def _recon_loss_kernel(pred_ref, gt_ref, out_ref, acc_ref, *,
                       loss_type, n_rows, tile_rows, inner,
                       n_full_blocks, num_logical_blocks):
    """Partial reduction of the elementwise reconstruction loss.

    pred_ref / gt_ref : (tile_rows, L) VMEM input tiles (lane-dense packed rows)
    out_ref           : (8, L) per-parallel-block partial-sum tile
    acc_ref           : (8, L) f32 VMEM accumulator, persistent across the
                        inner ("arbitrary") reduction axis
    """
    p = pl.program_id(0)   # parallel (row-range) axis
    k = pl.program_id(1)   # sequential reduction axis

    @pl.when(k == 0)
    def _():
        acc_ref[...] = jnp.zeros_like(acc_ref)

    # Loss math in bf16 when the inputs are bf16 (v6e/v7x bf16 VPU); the
    # cast to f32 happens before the row reduction so accumulation accuracy
    # and the f32 (8, L) accumulator layout are preserved.
    cdt = jnp.bfloat16 if pred_ref.dtype == jnp.bfloat16 else jnp.float32
    diff = pred_ref[...].astype(cdt) - gt_ref[...].astype(cdt)
    err = _elementwise_loss(diff, loss_type).astype(jnp.float32)

    lanes = err.shape[-1]
    blk = p * inner + k    # logical block index

    def _accumulate(e):
        # (tile_rows, L) -> (8, L) with pure elementwise vreg adds:
        # no cross-lane XLU work, no scalar RMW in the hot loop.
        acc_ref[...] += e.reshape(tile_rows // 8, 8, lanes).sum(axis=0)

    if n_full_blocks > 0:
        # Interior blocks: every row is valid -> completely mask-free path.
        @pl.when(blk < n_full_blocks)
        def _():
            _accumulate(err)

    if num_logical_blocks > n_full_blocks:
        # Ragged last block and clamped duplicate blocks only: zero rows past
        # n_rows via a select (Pallas does NOT zero-fill partial blocks, and
        # clamped blocks re-read the last block's data).
        @pl.when(blk >= n_full_blocks)
        def _():
            row = blk * tile_rows + lax.broadcasted_iota(jnp.int32, err.shape, 0)
            _accumulate(jnp.where(row < n_rows, err, 0.0))

    @pl.when(k == pl.num_programs(1) - 1)
    def _():
        out_ref[...] = acc_ref[...]


def _choose_pack_factor(n_rows, d, target_lanes=512):
    """Pick how many D-wide motion rows to fold into one ~512-lane kernel row.

    Prefers an m that divides n_rows exactly (the repack is then a pure
    bitcast reshape, no XLA prefix copy); falls back to the target otherwise.
    """
    m_target = max(1, target_lanes // d)
    if m_target == 1:
        return 1
    best_m, best_util = None, -1.0
    for m in range(m_target, max(1, m_target // 2) - 1, -1):
        if n_rows % m == 0:
            lanes = m * d
            util = lanes / (pl.cdiv(lanes, 128) * 128)
            if util > best_util:
                best_m, best_util = m, util
    return best_m if best_m is not None else m_target


@functools.partial(
    jax.jit,
    static_argnames=("motion_dim", "loss_type", "tile_bytes", "num_parallel",
                     "vmem_limit_bytes"))
def recon_loss_pallas(motion_pred, motion_gt, *, motion_dim,
                      loss_type="l1_smooth",
                      tile_bytes=2 * 1024 * 1024,   # per input block (padded)
                      num_parallel=2,
                      vmem_limit_bytes=None):
    """Pallas implementation of ReconLoss.forward (mean reduction)."""
    assert motion_pred.shape == motion_gt.shape
    D = motion_pred.shape[-1]
    assert 0 < motion_dim <= D

    # Flatten all leading axes into rows; feature axis stays last.
    pred2d = motion_pred.reshape(-1, D)
    gt2d = motion_gt.reshape(-1, D)
    n_rows = pred2d.shape[0]
    n_elems = n_rows * motion_dim
    if n_elems == 0:
        # torch's mean over an empty tensor is nan
        return jnp.float32(jnp.nan)

    # ---- lane-dense repack ------------------------------------------------
    m = _choose_pack_factor(n_rows, D)
    L = m * D
    R = n_rows // m            # packed rows processed by the kernel
    rem = n_rows - R * m       # leftover original rows (handled in plain jnp)

    def _tail_sum(lo):
        # Loss-sum of original rows [lo:] over the first motion_dim features.
        if lo >= n_rows:
            return jnp.float32(0.0)
        dp = (pred2d[lo:, :motion_dim].astype(jnp.float32)
              - gt2d[lo:, :motion_dim].astype(jnp.float32))
        return jnp.sum(_elementwise_loss(dp, loss_type))

    if R == 0:
        # Fewer rows than one packed row: the input is tiny, just use jnp.
        return _tail_sum(0) / jnp.float32(n_elems)

    if rem == 0:
        # Pure bitcast reshape: zero extra HBM traffic.
        pred_pk = pred2d.reshape(R, L)
        gt_pk = gt2d.reshape(R, L)
    else:
        # Prefix slice may be materialized by XLA; the divisor search above
        # avoids this in the common case and the leftover rows are tiny.
        pred_pk = pred2d[: R * m].reshape(R, L)
        gt_pk = gt2d[: R * m].reshape(R, L)

    # ---- tile sizing (bytes-based, sublane-correct rounding) ---------------
    itemsize = jnp.dtype(motion_pred.dtype).itemsize
    sub = 8 if itemsize >= 4 else (16 if itemsize == 2 else 32)
    lanes_padded = pl.cdiv(L, 128) * 128
    row_bytes = lanes_padded * itemsize
    tr = max(sub, (int(tile_bytes) // row_bytes // sub) * sub)
    tr = min(tr, pl.cdiv(R, sub) * sub)     # don't over-allocate for tiny inputs

    n_blocks = pl.cdiv(R, tr)
    n_full = R // tr                        # blocks where every row is valid
    P = max(1, min(int(num_parallel), n_blocks))
    inner = pl.cdiv(n_blocks, P)
    num_logical = P * inner
    last_blk = n_blocks - 1

    def in_map(pi, ki):
        # Clamp so the DMA never targets a block fully past the array end;
        # the kernel zeroes those rows via the logical row index.
        return (jnp.minimum(pi * inner + ki, last_blk), 0)

    def out_map(pi, ki):
        return (pi, 0)

    kernel = functools.partial(
        _recon_loss_kernel, loss_type=loss_type, n_rows=R, tile_rows=tr,
        inner=inner, n_full_blocks=n_full, num_logical_blocks=num_logical)

    cost = pl.CostEstimate(
        flops=5 * R * L,
        transcendentals=0,
        bytes_accessed=int(2 * R * L * itemsize + P * 8 * L * 4))

    cp_kwargs = dict(dimension_semantics=("parallel", "arbitrary"))
    if vmem_limit_bytes is not None:
        cp_kwargs["vmem_limit_bytes"] = int(vmem_limit_bytes)

    partial_sums = pl.pallas_call(
        kernel,
        out_shape=jax.ShapeDtypeStruct((P * 8, L), jnp.float32),
        grid_spec=pltpu.PrefetchScalarGridSpec(
            num_scalar_prefetch=0,
            grid=(P, inner),
            in_specs=[pl.BlockSpec((tr, L), in_map),
                      pl.BlockSpec((tr, L), in_map)],
            out_specs=pl.BlockSpec((8, L), out_map),
            scratch_shapes=[pltpu.VMEM((8, L), jnp.float32)],
        ),
        compiler_params=pltpu.CompilerParams(**cp_kwargs),
        cost_estimate=cost,
    )(pred_pk, gt_pk)

    # Column mask hoisted out of the hot loop: undo the lane packing on the
    # tiny partial sums and SLICE the valid feature columns (never multiply
    # by a 0/1 mask), then one cheap global reduction.
    feat_sums = partial_sums.reshape(P * 8 * m, D)[:, :motion_dim]
    total = jnp.sum(feat_sums) + _tail_sum(R * m)

    # torch reduction='mean' divides by n_rows * motion_dim.
    return total / jnp.float32(n_elems)


def recon_loss_ref(motion_pred, motion_gt, *, motion_dim, loss_type):
    """Pure-JAX reference mirroring the PyTorch module."""
    p = motion_pred[..., :motion_dim].astype(jnp.float32)
    g = motion_gt[..., :motion_dim].astype(jnp.float32)
    d = p - g
    return jnp.mean(_elementwise_loss(d, loss_type))


if __name__ == "__main__":
    # ReconLoss(recon_loss='l1_smooth', nb_joints=4):
    #   motion_dim = 4 + (4 - 1) * 12 + 3 + 4 = 47, feature dim D = 51
    nb_joints = 4
    motion_dim = 4 + (nb_joints - 1) * 12 + 3 + 4  # 47

    key = jax.random.PRNGKey(0)

    cases = [
        # (shape, loss_type, dtype, kwargs, rtol, atol)
        ((2, 8, 51), "l1_smooth", jnp.float32, {}, 1e-5, 1e-6),       # single ragged block
        ((3, 7, 51), "l2", jnp.float32, {}, 1e-5, 1e-6),              # m=7 packing path
        ((1, 23, 51), "l1", jnp.float32, {}, 1e-5, 1e-6),             # prime rows: leftover path
        ((4, 125, 51), "l1_smooth", jnp.float32,                      # multi-block + ragged tail
         {"tile_bytes": 32 * 1024}, 1e-5, 1e-6),
        ((4, 120, 51), "l1", jnp.float32,                             # clamped duplicate block
         {"tile_bytes": 32 * 1024}, 1e-5, 1e-6),
        ((4, 120, 51), "l1_smooth", jnp.bfloat16,                     # bf16 compute path
         {"tile_bytes": 32 * 1024}, 2e-2, 1e-3),
    ]

    for shape, loss_type, dtype, kwargs, rtol, atol in cases:
        key, k1, k2 = jax.random.split(key, 3)
        motion_pred = jax.random.normal(k1, shape, dtype=jnp.float32).astype(dtype)
        motion_gt = jax.random.normal(k2, shape, dtype=jnp.float32).astype(dtype)

        out = recon_loss_pallas(motion_pred, motion_gt, motion_dim=motion_dim,
                                loss_type=loss_type, **kwargs)
        out = jax.block_until_ready(out)

        ref = recon_loss_ref(motion_pred, motion_gt, motion_dim=motion_dim,
                             loss_type=loss_type)
        assert jnp.allclose(out, ref, rtol=rtol, atol=atol), \
            (shape, loss_type, dtype, float(out), float(ref))

    print("KERNEL_OK")
</pallas_src>

<mosaic_0001>
module attributes {stable_mosaic.version = 11 : i64} {
  func.func @_recon_loss_kernel(%arg0: i32, %arg1: i32, %arg2: memref<8x408xf32, #tpu.memory_space<vmem>>, %arg3: memref<8x408xf32, #tpu.memory_space<vmem>>, %arg4: memref<8x408xf32, #tpu.memory_space<vmem>>, %arg5: memref<8x408xf32, #tpu.memory_space<vmem>>) attributes {dimension_semantics = [#tpu.dimension_semantics<parallel>, #tpu.dimension_semantics<arbitrary>], iteration_bounds = array<i64: 1, 1>, scalar_prefetch = 0 : i64, scratch_operands = 1 : i64, tpu.core_type = #tpu.core_type<tc>, window_params = [{transform_indices = @transform_0, window_bounds = array<i64: 8, 408>}, {transform_indices = @transform_1, window_bounds = array<i64: 8, 408>}, {transform_indices = @transform_2, window_bounds = array<i64: 8, 408>}]} {
    %c0_i32 = arith.constant 0 : i32
    %0 = arith.cmpi eq, %arg1, %c0_i32 : i32
    %1 = arith.extui %0 : i1 to i32
    %c0_i32_0 = arith.constant 0 : i32
    %2 = arith.cmpi ne, %1, %c0_i32_0 : i32
    scf.if %2 {
      %cst_10 = arith.constant 0.000000e+00 : f32
      %23 = vector.broadcast %cst_10 : f32 to vector<8x408xf32>
      %c0_11 = arith.constant 0 : index
      %c0_12 = arith.constant 0 : index
      %24 = vector.load %arg5[%c0_11, %c0_12] : memref<8x408xf32, #tpu.memory_space<vmem>>, vector<8x408xf32>
      tpu.vector_store %arg5[%c0_11, %c0_12], %23 {strides = array<i32>} : memref<8x408xf32, #tpu.memory_space<vmem>>, vector<8x408xf32>,
    } else {
    }
    %c0 = arith.constant 0 : index
    %c0_1 = arith.constant 0 : index
    %3 = vector.load %arg2[%c0, %c0_1] : memref<8x408xf32, #tpu.memory_space<vmem>>, vector<8x408xf32>
    %c0_2 = arith.constant 0 : index
    %c0_3 = arith.constant 0 : index
    %4 = vector.load %arg3[%c0_2, %c0_3] : memref<8x408xf32, #tpu.memory_space<vmem>>, vector<8x408xf32>
    %5 = arith.subf %3, %4 : vector<8x408xf32>
    %6 = math.absf %5 : vector<8x408xf32>
    %cst = arith.constant 1.000000e+00 : f32
    %7 = vector.broadcast %cst : f32 to vector<8x408xf32>
    %8 = arith.cmpf olt, %6, %7 : vector<8x408xf32>
    %cst_4 = arith.constant 5.000000e-01 : f32
    %9 = vector.broadcast %cst_4 : f32 to vector<8x408xf32>
    %10 = arith.mulf %9, %5 : vector<8x408xf32>
    %11 = arith.mulf %10, %5 : vector<8x408xf32>
    %cst_5 = arith.constant 5.000000e-01 : f32
    %12 = vector.broadcast %cst_5 : f32 to vector<8x408xf32>
    %13 = arith.subf %6, %12 : vector<8x408xf32>
    %14 = arith.select %8, %11, %13 : vector<8x408xi1>, vector<8x408xf32>
    %c1_i32 = arith.constant 1 : i32
    %15 = arith.muli %arg0, %c1_i32 : i32
    %16 = arith.addi %15, %arg1 : i32
    %c0_i32_6 = arith.constant 0 : i32
    %17 = arith.cmpi sge, %16, %c0_i32_6 : i32
    %18 = arith.extui %17 : i1 to i32
    %c0_i32_7 = arith.constant 0 : i32
    %19 = arith.cmpi ne, %18, %c0_i32_7 : i32
    scf.if %19 {
      %c8_i32 = arith.constant 8 : i32
      %23 = arith.muli %16, %c8_i32 : i32
      %24 = tpu.iota {dimensions = array<i32: 0>} : vector<8x408xi32>
      %25 = vector.broadcast %23 : i32 to vector<8x408xi32>
      %26 = arith.addi %25, %24 : vector<8x408xi32>
      %c2_i32 = arith.constant 2 : i32
      %27 = vector.broadcast %c2_i32 : i32 to vector<8x408xi32>
      %28 = arith.cmpi slt, %26, %27 : vector<8x408xi32>
      %cst_10 = arith.constant 0.000000e+00 : f32
      %29 = vector.broadcast %cst_10 : f32 to vector<8x408xf32>
      %30 = arith.select %28, %14, %29 : vector<8x408xi1>, vector<8x408xf32>
      %c0_11 = arith.constant 0 : index
      %c0_12 = arith.constant 0 : index
      %31 = vector.load %arg5[%c0_11, %c0_12] : memref<8x408xf32, #tpu.memory_space<vmem>>, vector<8x408xf32>
      %32 = vector.shape_cast %30 : vector<8x408xf32> to vector<1x8x408xf32>
      %cst_13 = arith.constant dense<0.000000e+00> : vector<8x408xf32>
      %33 = vector.multi_reduction <add>, %32, %cst_13 [0] : vector<1x8x408xf32> to vector<8x408xf32>
      %34 = arith.addf %31, %33 : vector<8x408xf32>
      %c0_14 = arith.constant 0 : index
      %c0_15 = arith.constant 0 : index
      %35 = vector.load %arg5[%c0_14, %c0_15] : memref<8x408xf32, #tpu.memory_space<vmem>>, vector<8x408xf32>
      tpu.vector_store %arg5[%c0_14, %c0_15], %34 {strides = array<i32>} : memref<8x408xf32, #tpu.memory_space<vmem>>, vector<8x408xf32>,
    } else {
    }
    %c0_i32_8 = arith.constant 0 : i32
    %20 = arith.cmpi eq, %arg1, %c0_i32_8 : i32
    %21 = arith.extui %20 : i1 to i32
    %c0_i32_9 = arith.constant 0 : i32
    %22 = arith.cmpi ne, %21, %c0_i32_9 : i32
    scf.if %22 {
      %c0_10 = arith.constant 0 : index
      %c0_11 = arith.constant 0 : index
      %23 = vector.load %arg5[%c0_10, %c0_11] : memref<8x408xf32, #tpu.memory_space<vmem>>, vector<8x408xf32>
      %c0_12 = arith.constant 0 : index
      %c0_13 = arith.constant 0 : index
      %24 = vector.load %arg4[%c0_12, %c0_13] : memref<8x408xf32, #tpu.memory_space<vmem>>, vector<8x408xf32>
      tpu.vector_store %arg4[%c0_12, %c0_13], %23 {strides = array<i32>} : memref<8x408xf32, #tpu.memory_space<vmem>>, vector<8x408xf32>,
    } else {
    }
    return
  }
  func.func @transform_0(%arg0: i32, %arg1: i32) -> (i32, i32) {
    %c1_i32 = arith.constant 1 : i32
    %0 = arith.muli %arg0, %c1_i32 : i32
    %1 = arith.addi %0, %arg1 : i32
    %c0_i32 = arith.constant 0 : i32
    %2 = arith.minsi %1, %c0_i32 : i32
    %c0_i32_0 = arith.constant 0 : i32
    %c0_i32_1 = arith.constant 0 : i32
    return %2, %c0_i32_0 : i32, i32
  }
  func.func @transform_1(%arg0: i32, %arg1: i32) -> (i32, i32) {
    %c1_i32 = arith.constant 1 : i32
    %0 = arith.muli %arg0, %c1_i32 : i32
    %1 = arith.addi %0, %arg1 : i32
    %c0_i32 = arith.constant 0 : i32
    %2 = arith.minsi %1, %c0_i32 : i32
    %c0_i32_0 = arith.constant 0 : i32
    %c0_i32_1 = arith.constant 0 : i32
    return %2, %c0_i32_0 : i32, i32
  }
  func.func @transform_2(%arg0: i32, %arg1: i32) -> (i32, i32) {
    %c0_i32 = arith.constant 0 : i32
    %c0_i32_0 = arith.constant 0 : i32
    return %arg0, %c0_i32 : i32, i32
  }
}

</mosaic_0001>

<llo_original>
// kernel: recon_loss_pallas.1
$region0: #{recon_loss_pallas.1}
  #allocation0 [shape = 'u32[]', space=smem, size = 0x4, offset = 0x4, fixed_abs, tag = 'smem constant byte address 0x4 - core index']
  #allocation1 [shape = 'u32[144,128]{1,0:T(1,128)}', space=vmem, size = 0x12000, scoped, tag = 'internal scratch']
  #allocation2 [shape = 'f32[8,408]{1,0:T(8,128)}', space=vmem, size = 0x4000, scoped, tag = 'scratch operand']
  %s0 = inlined_call_operand.vmem [shape: f32[2,408], index: 0, kind: input, shape index: {}]
  %s1 = inlined_call_operand.vmem [shape: f32[2,408], index: 1, kind: input, shape index: {}]
  %s2 = inlined_call_operand.vmem [shape: f32[8,408], index: 2, kind: output, shape index: {}]
  %s3 = sld [smem:[#allocation0]]
  $region30: #{recon_loss_pallas.1} parent=0
    _
  %s5 = ssub.s32 1, %s3
  %s6 = scalar_select 0, %s5, %s3
  // Predicated region
  $region2: #{recon_loss_pallas.1} parent=0 // pred_check
    _
  $region3: #{recon_loss_pallas.1} parent=0 // pred_check_branch
    %8 = sbr.rel (0) target = $region5
  $region4: #{recon_loss_pallas.1} parent=0 // pred_region
    %s9 = sadd.s32 0, 0
    %p10 = scmp.lt.s32.totalorder %s9, 0
    %s11 = scalar_select %p10, %s9, 0
    %s12 = smul.u32 4, %s11
    %s13 = ssub.s32 1, %s12
    %s14 = smul.u32 32, %s13
    %s15 = smul.u32 %s14, 4
    %p16 = scmp.lt.s32.totalorder %s12, 0
    %s17 = scalar_select %p16, %s12, 0
    %s18 = smul.addr %s17, 4
    %s19 = smul.addr %s18, 2
    %s20 = scalar_lea.vmem %s0, %s19
    %s21 = sadd.s32 0, 0
    %p22 = scmp.lt.s32.totalorder %s21, 0
    %s23 = scalar_select %p22, %s21, 0
    %s24 = smul.u32 4, %s23
    %s25 = ssub.s32 1, %s24
    %s26 = smul.u32 32, %s25
    %s27 = smul.u32 %s26, 4
  $region5: #{recon_loss_pallas.1} parent=0 // pred_fallthru
    _
  // Predicated region
  $region6: #{recon_loss_pallas.1} parent=0 // pred_check
    _
  $region7: #{recon_loss_pallas.1} parent=0 // pred_check_branch
    %29 = sbr.rel (0) target = $region9
  $region8: #{recon_loss_pallas.1} parent=0 // pred_region
    %s30 = sadd.s32 0, 0
    %p31 = scmp.lt.s32.totalorder %s30, 0
    %s32 = scalar_select %p31, %s30, 0
    %s33 = smul.u32 4, %s32
    %s34 = ssub.s32 1, %s33
    %s35 = smul.u32 32, %s34
    %s36 = smul.u32 %s35, 4
    %p37 = scmp.lt.s32.totalorder %s33, 0
    %s38 = scalar_select %p37, %s33, 0
    %s39 = smul.addr %s38, 4
    %s40 = smul.addr %s39, 2
    %s41 = scalar_lea.vmem %s1, %s40
    %s42 = sadd.s32 0, 0
    %p43 = scmp.lt.s32.totalorder %s42, 0
    %s44 = scalar_select %p43, %s42, 0
    %s45 = smul.u32 4, %s44
    %s46 = ssub.s32 1, %s45
    %s47 = smul.u32 32, %s46
    %s48 = smul.u32 %s47, 4
  $region9: #{recon_loss_pallas.1} parent=0 // pred_fallthru
    _
  %s49 = sadd.s32 0, 0
  %p50 = scmp.lt.s32.totalorder %s49, 0
  %s51 = scalar_select %p50, %s49, 0
  %s52 = smul.u32 4, %s51
  %s53 = ssub.s32 1, %s52
  %s54 = smul.u32 32, %s53
  %s55 = smul.u32 %s54, 4
  %p56 = scmp.lt.s32.totalorder %s52, 0
  %s57 = scalar_select %p56, %s52, 0
  %s58 = smul.addr %s57, 4
  %s59 = smul.addr %s58, 2
  %s60 = scalar_lea.vmem %s0, %s59
  %s61 = sadd.s32 0, 0
  %p62 = scmp.lt.s32.totalorder %s61, 0
  %s63 = scalar_select %p62, %s61, 0
  %s64 = smul.u32 4, %s63
  %s65 = ssub.s32 1, %s64
  %s66 = smul.u32 32, %s65
  %s67 = smul.u32 %s66, 4
  %p68 = scmp.lt.s32.totalorder %s64, 0
  %s69 = scalar_select %p68, %s64, 0
  %s70 = smul.addr %s69, 4
  %s71 = smul.addr %s70, 2
  %s72 = scalar_lea.vmem %s1, %s71
  %s73 = sadd.s32 0, 0
  %p74 = scmp.lt.s32.totalorder %s73, 0
  %s75 = scalar_select %p74, %s73, 0
  %s76 = smul.u32 4, %s75
  %s77 = ssub.s32 1, %s76
  %s78 = smul.u32 32, %s77
  %s79 = smul.u32 %s78, 4
  %p80 = scmp.lt.s32.totalorder %s76, 0
  %s81 = scalar_select %p80, %s76, 0
  %s82 = smul.addr %s81, 4
  %s83 = smul.addr %s82, 2
  %s84 = scalar_lea.vmem %s0, %s83
  %s85 = sadd.s32 0, 0
  %p86 = scmp.lt.s32.totalorder %s85, 0
  %s87 = scalar_select %p86, %s85, 0
  %s88 = smul.u32 4, %s87
  %s89 = ssub.s32 1, %s88
  %s90 = smul.u32 32, %s89
  %s91 = smul.u32 %s90, 4
  %s92 = sadd.s32 0, 0
  %p93 = scmp.lt.s32.totalorder %s92, 0
  %s94 = scalar_select %p93, %s92, 0
  %s95 = smul.u32 4, %s94
  %s96 = ssub.s32 1, %s95
  %s97 = smul.u32 32, %s96
  %s98 = smul.u32 %s97, 4
  %p99 = scmp.lt.s32.totalorder %s95, 0
  %s100 = scalar_select %p99, %s95, 0
  %s101 = smul.addr %s100, 4
  %s102 = smul.addr %s101, 2
  %s103 = scalar_lea.vmem %s1, %s102
  %s104 = sadd.s32 0, 0
  %p105 = scmp.lt.s32.totalorder %s104, 0
  %s106 = scalar_select %p105, %s104, 0
  %s107 = smul.u32 4, %s106
  %s108 = ssub.s32 1, %s107
  %s109 = smul.u32 32, %s108
  %s110 = smul.u32 %s109, 4
  %p111 = scmp.eq.s32.totalorder 0, 0
  // Predicated region
  $region10: #{recon_loss_pallas.1} parent=0 // pred_check
    %p112 = pneg %p111
  $region11: #{recon_loss_pallas.1} parent=0 // pred_check_branch
    %114 = sbr.rel (%p112) target = $region13
  $region12: #{recon_loss_pallas.1} parent=0 // pred_region
    %115 = vst [vmem:[#allocation2] sm:$0xff] 0.0
    %116 = vst [vmem:[#allocation2 + $0x8] sm:$0xff] 0.0
    %117 = vst [vmem:[#allocation2 + $0x10] sm:$0xff] 0.0
    %vm118 = vcmask 195584
    %119 = vst.msk [vmem:[#allocation2 + $0x18] sm:$0xff] %vm118, 0.0
  $region13: #{recon_loss_pallas.1} parent=0 // pred_fallthru
    _
  %v120 = vld [vmem:[%s84] sm:$0xff]
  %v121 = vld [vmem:[%s84 + $0x8] sm:$0xff]
  %v122 = vld [vmem:[%s84 + $0x10] sm:$0xff]
  %v123 = vld [vmem:[%s84 + $0x18] sm:$0xff]
  %v124 = vld [vmem:[%s103] sm:$0xff]
  %v125 = vld [vmem:[%s103 + $0x8] sm:$0xff]
  %v126 = vld [vmem:[%s103 + $0x10] sm:$0xff]
  %v127 = vld [vmem:[%s103 + $0x18] sm:$0xff]
  %v128 = vsub.f32 %v120, %v124
  %v129 = vsub.f32 %v121, %v125
  %v130 = vsub.f32 %v122, %v126
  %v131 = vsub.f32 %v123, %v127
  %v132 = vand.u32 2147483647, %v128
  %v133 = vand.u32 2147483647, %v129
  %v134 = vand.u32 2147483647, %v130
  %v135 = vand.u32 2147483647, %v131
  %vm136 = vcmp.lt.f32.partialorder %v132, 1.0
  %vm137 = vcmp.lt.f32.partialorder %v133, 1.0
  %vm138 = vcmp.lt.f32.partialorder %v134, 1.0
  %vm139 = vcmp.lt.f32.partialorder %v135, 1.0
  %v140 = vmul.f32 %v128, 0.5
  %v141 = vmul.f32 %v129, 0.5
  %v142 = vmul.f32 %v130, 0.5
  %v143 = vmul.f32 %v131, 0.5
  %v144 = vmul.f32 %v140, %v128
  %v145 = vmul.f32 %v141, %v129
  %v146 = vmul.f32 %v142, %v130
  %v147 = vmul.f32 %v143, %v131
  %v148 = vsub.f32 %v132, 0.5
  %v149 = vsub.f32 %v133, 0.5
  %v150 = vsub.f32 %v134, 0.5
  %v151 = vsub.f32 %v135, 0.5
  %v152 = vsel %vm136, %v144, %v148
  %v153 = vsel %vm137, %v145, %v149
  %v154 = vsel %vm138, %v146, %v150
  %v155 = vsel %vm139, %v147, %v151
  %s156 = sadd.s32 0, 0
  %p157 = scmp.ge.s32.totalorder %s156, 0
  // Predicated region
  $region14: #{recon_loss_pallas.1} parent=0 // pred_check
    %p158 = pneg %p157
  $region15: #{recon_loss_pallas.1} parent=0 // pred_check_branch
    %160 = sbr.rel (%p158) target = $region17
  $region16: #{recon_loss_pallas.1} parent=0 // pred_region
    %s161 = smul.u32 %s156, 8
    %v162 = vlaneseq
    %v163 = vshrl.u32 %v162, 7
    %v164 = vstv %s161
    %v165 = vadd.s32 %v164, %v163
    %vm166 = vcmp.lt.s32.totalorder %v165, 2
    %v171 = vcombine.low %v152, %v153
    %v172 = vcombine.high %v152, %v153
    %v173 = vcombine.low %v154, %v155
    %v174 = vcombine.high %v154, %v155
    %v176 = vunpack.c.l.s4 1983009808
    %v177 = vunpack.c.0.s8 %v176
    %v178 = vlaneseq
    %v179 = vshrl.u32 %v178, 7
    %v180 = vsub.s32 %v177, %v179
    %v181 = vrot.slane %v171, %v180
    %v183 = vunpack.c.l.s4 1983009808
    %v184 = vunpack.c.0.s8 %v183
    %v185 = vlaneseq
    %v186 = vshrl.u32 %v185, 7
    %v187 = vsub.s32 %v184, %v186
    %v188 = vrot.slane %v172, %v187
    %v190 = vunpack.c.l.s4 1983009808
    %v191 = vunpack.c.0.s8 %v190
    %v192 = vlaneseq
    %v193 = vshrl.u32 %v192, 7
    %v194 = vsub.s32 %v191, %v193
    %v195 = vrot.slane %v173, %v194
    %v197 = vunpack.c.l.s4 1983009808
    %v198 = vunpack.c.0.s8 %v197
    %v199 = vlaneseq
    %v200 = vshrl.u32 %v199, 7
    %v201 = vsub.s32 %v198, %v200
    %v202 = vrot.slane %v174, %v201
    %v203 = vcombine.low %v181, %v195
    %v204 = vcombine.high %v181, %v195
    %v205 = vcombine.low %v188, %v202
    %v206 = vcombine.high %v188, %v202
    %v211 = vsel %vm166, %v203, 0.0
    %v212 = vsel %vm166, %v204, 0.0
    %v213 = vsel %vm166, %v205, 0.0
    %v214 = vsel %vm166, %v206, 0.0
    %v215 = vld [vmem:[#allocation2] sm:$0xff]
    %v216 = vld [vmem:[#allocation2 + $0x8] sm:$0xff]
    %v217 = vld [vmem:[#allocation2 + $0x10] sm:$0xff]
    %v218 = vld [vmem:[#allocation2 + $0x18] sm:$0xff]
    %v219 = vadd.f32 %v211, 0.0
    %v220 = vadd.f32 %v212, 0.0
    %v221 = vadd.f32 %v213, 0.0
    %v222 = vadd.f32 %v214, 0.0
    %v223 = vadd.f32 %v215, %v219
    %v224 = vadd.f32 %v216, %v220
    %v225 = vadd.f32 %v217, %v221
    %v226 = vadd.f32 %v218, %v222
    %227 = vst [vmem:[#allocation2] sm:$0xff] %v223
    %228 = vst [vmem:[#allocation2 + $0x8] sm:$0xff] %v224
    %229 = vst [vmem:[#allocation2 + $0x10] sm:$0xff] %v225
    %vm230 = vcmask 195584
    %231 = vst.msk [vmem:[#allocation2 + $0x18] sm:$0xff] %vm230, %v226
  $region17: #{recon_loss_pallas.1} parent=0 // pred_fallthru
    _
  // Predicated region
  $region18: #{recon_loss_pallas.1} parent=0 // pred_check
    %p232 = pneg %p111
  $region19: #{recon_loss_pallas.1} parent=0 // pred_check_branch
    %234 = sbr.rel (%p232) target = $region21
  $region20: #{recon_loss_pallas.1} parent=0 // pred_region
    %v235 = vld [vmem:[#allocation2] sm:$0xff]
    %v236 = vld [vmem:[#allocation2 + $0x8] sm:$0xff]
    %v237 = vld [vmem:[#allocation2 + $0x10] sm:$0xff]
    %v238 = vld [vmem:[#allocation2 + $0x18] sm:$0xff]
    %239 = vst [vmem:[%s2] sm:$0xff] %v235
    %240 = vst [vmem:[%s2 + $0x8] sm:$0xff] %v236
    %241 = vst [vmem:[%s2 + $0x10] sm:$0xff] %v237
    %vm242 = vcmask 195584
    %243 = vst.msk [vmem:[%s2 + $0x18] sm:$0xff] %vm242, %v238
  $region21: #{recon_loss_pallas.1} parent=0 // pred_fallthru
    _
  // Predicated region
  $region22: #{recon_loss_pallas.1} parent=0 // pred_check
    _
  $region23: #{recon_loss_pallas.1} parent=0 // pred_check_branch
    %245 = sbr.rel (0) target = $region25
  $region24: #{recon_loss_pallas.1} parent=0 // pred_region
    _
  $region25: #{recon_loss_pallas.1} parent=0 // pred_fallthru
    _
  // Predicated region
  $region26: #{recon_loss_pallas.1} parent=0 // pred_check
    _
  $region27: #{recon_loss_pallas.1} parent=0 // pred_check_branch
    %247 = sbr.rel (0) target = $region29
  $region28: #{recon_loss_pallas.1} parent=0 // pred_region
    _
  $region29: #{recon_loss_pallas.1} parent=0 // pred_fallthru
    _

</llo_original>
